<compile_context>
chip_gen: v7x
topology: tpu7x:2x2x1
jax: 0.10.0
libtpu: 0.0.40
codegen_flags: <defaults>
</compile_context>

<pallas_src>
import jax
import jax.numpy as jnp
from jax.experimental import pallas as pl
from jax.experimental.pallas import tpu as pltpu


def _rup(v, m):
    return (v + m - 1) // m * m


def _pad_to(x, shape):
    return jnp.pad(x, [(0, s - d) for d, s in zip(x.shape, shape)])


# ---------------------------------------------------------------------------
# Fused Pallas kernel: RGCNConv (mean aggr) -> GraphConv (add aggr)
# ---------------------------------------------------------------------------
def make_gcn_fused_kernel(num_relations, n_pad, h1_dim):
    R, NP, H1 = num_relations, n_pad, h1_dim

    def kernel(a_cat_ref, a2_ref, deg_inv_ref, x_ref, wstack_ref, root_ref,
               bias_ref, w2_ref, linw_ref, linb_ref, o_ref, hcat_ref):
        x = x_ref[...]                                            # bf16 (NP, DinP)

        # All R relation projections in ONE lane-dense MXU pass:
        # (NP, DinP) @ (DinP, R*H1) -> f32 (NP, R*H1).
        h_all = jnp.dot(x, wstack_ref[...],
                        preferred_element_type=jnp.float32)

        # Re-block into H_cat layout (row r*NP + i = X @ W_r row i) via VMEM
        # scratch stores — no concatenate/transpose copies, cast to bf16 for
        # the next MXU pass. Static unroll over R.
        for r in range(R):
            hcat_ref[r * NP:(r + 1) * NP, :] = (
                h_all[:, r * H1:(r + 1) * H1].astype(hcat_ref.dtype))

        # conv1 message passing: ONE contraction with K = R*NP.
        # A_cat holds raw integer edge counts (exact in bf16).
        msg = jnp.dot(a_cat_ref[...], hcat_ref[...],
                      preferred_element_type=jnp.float32)         # (NP, H1)

        # RGCN aggr='mean': 1/deg row-scale applied post-matmul, in f32.
        msg = msg * deg_inv_ref[...]

        x1 = (msg
              + jnp.dot(x, root_ref[...], preferred_element_type=jnp.float32)
              + bias_ref[...])                                    # f32 (NP, H1)

        # conv2 (GraphConv, aggr='add'): A2 @ (x1 @ W2) + x1 @ lin_W + lin_b.
        # x1 never leaves VMEM/vregs; only MXU inputs are cast down to bf16.
        x1_bf = x1.astype(jnp.bfloat16)
        h2 = jnp.dot(x1_bf, w2_ref[...], preferred_element_type=jnp.float32)
        agg2 = jnp.dot(a2_ref[...], h2.astype(jnp.bfloat16),
                       preferred_element_type=jnp.float32)        # (NP, D2P)
        lin = (jnp.dot(x1_bf, linw_ref[...],
                       preferred_element_type=jnp.float32)
               + linb_ref[...])
        o_ref[...] = (agg2 + lin).astype(o_ref.dtype)

    return kernel


def gcn_fused(a_cat, a2, deg_inv, x_p, w_stack, root_p, bias_p,
              w2_p, linw_p, linb_p, *, num_relations, h1_dim):
    NP, DinP = x_p.shape
    RNP = a_cat.shape[1]
    RH1P = w_stack.shape[1]
    D2P = w2_p.shape[1]
    R = num_relations

    return pl.pallas_call(
        make_gcn_fused_kernel(R, NP, h1_dim),
        out_shape=jax.ShapeDtypeStruct((NP, D2P), jnp.float32),
        grid=(1,),
        in_specs=[
            pl.BlockSpec((NP, RNP), lambda i: (0, 0)),        # A_cat (bf16 counts)
            pl.BlockSpec((NP, NP), lambda i: (0, 0)),         # A2 (bf16 counts)
            pl.BlockSpec((NP, 1), lambda i: (0, 0)),          # deg_inv (f32)
            pl.BlockSpec((NP, DinP), lambda i: (0, 0)),       # X (bf16)
            pl.BlockSpec((DinP, RH1P), lambda i: (0, 0)),     # W_stack (bf16)
            pl.BlockSpec((DinP, h1_dim), lambda i: (0, 0)),   # root (bf16)
            pl.BlockSpec((1, h1_dim), lambda i: (0, 0)),      # bias (f32)
            pl.BlockSpec((h1_dim, D2P), lambda i: (0, 0)),    # W2 (bf16)
            pl.BlockSpec((h1_dim, D2P), lambda i: (0, 0)),    # lin_W^T (bf16)
            pl.BlockSpec((1, D2P), lambda i: (0, 0)),         # lin_b (f32)
        ],
        out_specs=pl.BlockSpec((NP, D2P), lambda i: (0, 0)),
        scratch_shapes=[pltpu.VMEM((R * NP, h1_dim), jnp.bfloat16)],  # H_cat
        compiler_params=pltpu.CompilerParams(
            dimension_semantics=("arbitrary",),
            vmem_limit_bytes=32 * 1024 * 1024,
        ),
    )(a_cat, a2, deg_inv, x_p, w_stack, root_p, bias_p, w2_p, linw_p, linb_p)


# ---------------------------------------------------------------------------
# GCN.forward glue
# ---------------------------------------------------------------------------
def gcn_forward(params, node_features, edge_index, edge_norm, edge_type,
                num_relations):
    # edge_norm is accepted but ignored: the PyTorch forward calls
    # conv1(x, edge_index, edge_type), so RGCNConv's edge_norm defaults to None.
    del edge_norm
    N, g_dim = node_features.shape
    h1_dim = params["root"].shape[1]
    h2_dim = params["w2"].shape[1]
    R = num_relations

    NP = _rup(N, 16)           # node dim: bf16-sublane-pack aligned
    DinP = _rup(g_dim, 128)    # lane-dense input-feature dim
    D2P = _rup(h2_dim, 128)    # lane-dense output-feature dim
    RH1 = R * h1_dim
    RH1P = _rup(RH1, 128)      # lane-dense packed relation-output dim

    src, tgt = edge_index[0], edge_index[1]

    # Adjacencies as RAW integer edge counts (exact in bf16 up to 256):
    #   A_cat[i, r*NP + j] = #edges j->i of type r   (built directly in the
    #   concatenated layout, single scatter)
    #   A2[i, j]           = #edges j->i              (conv2, aggr='add')
    a_cat = (jnp.zeros((NP, R * NP), jnp.float32)
             .at[tgt, edge_type * NP + src].add(1.0)).astype(jnp.bfloat16)
    a2 = (jnp.zeros((NP, NP), jnp.float32)
          .at[tgt, src].add(1.0)).astype(jnp.bfloat16)

    # RGCN aggr='mean' normalization over ALL incoming edges, applied in-kernel.
    deg = jnp.zeros((NP,), jnp.float32).at[tgt].add(1.0)
    deg_inv = (1.0 / jnp.maximum(deg, 1.0)).reshape(NP, 1).astype(jnp.float32)

    # Basis decomposition W_r = att[r] @ basis, then pack relations along the
    # OUTPUT axis: W_stack[:, r*h1:(r+1)*h1] = W_r.  Only the input dim is
    # zero-padded -> ~8x less DMA than per-relation (R, DinP, D1P) padding.
    w_r = jnp.einsum("rb,bio->rio", params["att"], params["basis"])  # (R,Din,h1)
    w_stack = jnp.transpose(w_r, (1, 0, 2)).reshape(g_dim, RH1)
    w_stack = _pad_to(w_stack, (DinP, RH1P)).astype(jnp.bfloat16)

    x_p = _pad_to(node_features, (NP, DinP)).astype(jnp.bfloat16)
    root_p = _pad_to(params["root"], (DinP, h1_dim)).astype(jnp.bfloat16)
    bias_p = params["bias"].reshape(1, h1_dim).astype(jnp.float32)
    w2_p = _pad_to(params["w2"], (h1_dim, D2P)).astype(jnp.bfloat16)
    linw_p = _pad_to(params["lin_w"].T, (h1_dim, D2P)).astype(jnp.bfloat16)
    linb_p = _pad_to(params["lin_b"].reshape(1, -1), (1, D2P)).astype(jnp.float32)

    out_p = gcn_fused(a_cat, a2, deg_inv, x_p, w_stack, root_p, bias_p,
                      w2_p, linw_p, linb_p,
                      num_relations=R, h1_dim=h1_dim)
    return out_p[:N, :h2_dim]


# Pure-JAX reference (edge-list form, mirrors torch_geometric message passing)
def gcn_forward_ref(params, x, edge_index, edge_type):
    src, tgt = edge_index[0], edge_index[1]
    N = x.shape[0]
    w_r = jnp.einsum("rb,bio->rio", params["att"], params["basis"])
    msg = jnp.einsum("ed,edo->eo", x[src], w_r[edge_type])
    agg = jnp.zeros((N, w_r.shape[2]), jnp.float32).at[tgt].add(msg)
    deg = jnp.zeros((N,), jnp.float32).at[tgt].add(1.0)
    agg = agg / jnp.maximum(deg, 1.0)[:, None]
    x1 = agg + x @ params["root"] + params["bias"]
    h = x1 @ params["w2"]
    agg2 = jnp.zeros((N, h.shape[1]), jnp.float32).at[tgt].add(h[src])
    return agg2 + x1 @ params["lin_w"].T + params["lin_b"]


# ---------------------------------------------------------------------------
if __name__ == "__main__":
    # Small shapes consistent with the module.
    N = 16            # number of graph nodes (utterances)
    g_dim, h1_dim, h2_dim = 32, 32, 32
    n_speakers = 2
    num_relations = 2 * n_speakers ** 2   # = 8
    num_bases = 16
    E = 48            # number of edges

    key = jax.random.PRNGKey(0)
    ks = jax.random.split(key, 10)

    params = {
        # RGCNConv(g_dim, h1_dim, num_relations, num_bases=16)
        "basis": jax.random.normal(ks[0], (num_bases, g_dim, h1_dim), jnp.float32) * 0.1,
        "att":   jax.random.normal(ks[1], (num_relations, num_bases), jnp.float32) * 0.1,
        "root":  jax.random.normal(ks[2], (g_dim, h1_dim), jnp.float32) * 0.1,
        "bias":  jax.random.normal(ks[3], (h1_dim,), jnp.float32) * 0.1,
        # GraphConv(h1_dim, h2_dim): weight + nn.Linear(h1_dim, h2_dim)
        "w2":    jax.random.normal(ks[4], (h1_dim, h2_dim), jnp.float32) * 0.1,
        "lin_w": jax.random.normal(ks[5], (h2_dim, h1_dim), jnp.float32) * 0.1,
        "lin_b": jax.random.normal(ks[6], (h2_dim,), jnp.float32) * 0.1,
    }

    node_features = jax.random.normal(ks[7], (N, g_dim), jnp.float32)
    edge_index = jax.random.randint(ks[8], (2, E), 0, N, dtype=jnp.int32)
    edge_type = jax.random.randint(ks[9], (E,), 0, num_relations, dtype=jnp.int32)
    edge_norm = jnp.ones((E,), jnp.float32)   # unused by the forward (see above)

    out = gcn_forward(params, node_features, edge_index, edge_norm, edge_type,
                      num_relations)
    out = jax.block_until_ready(out)

    ref = gcn_forward_ref(params, node_features, edge_index, edge_type)
    assert out.shape == (N, h2_dim)
    # bf16 MXU operands (f32 accumulation) -> loosened tolerance vs f32 ref.
    assert jnp.allclose(out, ref, atol=5e-2, rtol=5e-2), \
        f"max abs err {jnp.max(jnp.abs(out - ref))}"

    print("KERNEL_OK")
</pallas_src>

<mosaic_0001>
module attributes {stable_mosaic.version = 11 : i64} {
  func.func @kernel(%arg0: i32, %arg1: memref<16x128xbf16, #tpu.memory_space<vmem>>, %arg2: memref<16x16xbf16, #tpu.memory_space<vmem>>, %arg3: memref<16x1xf32, #tpu.memory_space<vmem>>, %arg4: memref<16x128xbf16, #tpu.memory_space<vmem>>, %arg5: memref<128x256xbf16, #tpu.memory_space<vmem>>, %arg6: memref<128x32xbf16, #tpu.memory_space<vmem>>, %arg7: memref<1x32xf32, #tpu.memory_space<vmem>>, %arg8: memref<32x128xbf16, #tpu.memory_space<vmem>>, %arg9: memref<32x128xbf16, #tpu.memory_space<vmem>>, %arg10: memref<1x128xf32, #tpu.memory_space<vmem>>, %arg11: memref<16x128xf32, #tpu.memory_space<vmem>>, %arg12: memref<128x32xbf16, #tpu.memory_space<vmem>>) attributes {dimension_semantics = [#tpu.dimension_semantics<arbitrary>], iteration_bounds = array<i64: 1>, scalar_prefetch = 0 : i64, scratch_operands = 1 : i64, tpu.core_type = #tpu.core_type<tc>, window_params = [{pipeline_mode = #tpu.pipeline_mode<synchronous>, transform_indices = @transform_0, window_bounds = array<i64: 16, 128>}, {pipeline_mode = #tpu.pipeline_mode<synchronous>, transform_indices = @transform_1, window_bounds = array<i64: 16, 16>}, {pipeline_mode = #tpu.pipeline_mode<synchronous>, transform_indices = @transform_2, window_bounds = array<i64: 16, 1>}, {pipeline_mode = #tpu.pipeline_mode<synchronous>, transform_indices = @transform_3, window_bounds = array<i64: 16, 128>}, {pipeline_mode = #tpu.pipeline_mode<synchronous>, transform_indices = @transform_4, window_bounds = array<i64: 128, 256>}, {pipeline_mode = #tpu.pipeline_mode<synchronous>, transform_indices = @transform_5, window_bounds = array<i64: 128, 32>}, {pipeline_mode = #tpu.pipeline_mode<synchronous>, transform_indices = @transform_6, window_bounds = array<i64: 1, 32>}, {pipeline_mode = #tpu.pipeline_mode<synchronous>, transform_indices = @transform_7, window_bounds = array<i64: 32, 128>}, {pipeline_mode = #tpu.pipeline_mode<synchronous>, transform_indices = @transform_8, window_bounds = array<i64: 32, 128>}, {pipeline_mode = #tpu.pipeline_mode<synchronous>, transform_indices = @transform_9, window_bounds = array<i64: 1, 128>}, {pipeline_mode = #tpu.pipeline_mode<synchronous>, transform_indices = @transform_10, window_bounds = array<i64: 16, 128>}]} {
    %c0 = arith.constant 0 : index
    %c0_0 = arith.constant 0 : index
    %0 = vector.load %arg4[%c0, %c0_0] : memref<16x128xbf16, #tpu.memory_space<vmem>>, vector<16x128xbf16>
    %c0_1 = arith.constant 0 : index
    %c0_2 = arith.constant 0 : index
    %1 = vector.load %arg5[%c0_1, %c0_2] : memref<128x256xbf16, #tpu.memory_space<vmem>>, vector<128x256xbf16>
    %cst = arith.constant dense<0.000000e+00> : vector<16x256xf32>
    %2 = tpu.matmul %0, %1, %cst {dimension_numbers = #tpu.dot_dimension_numbers<[1], [0], [0], [1], [0, 0, 1, 1], [], []>} : vector<16x128xbf16>, vector<128x256xbf16>, vector<16x256xf32> -> vector<16x256xf32>
    %3 = vector.extract_strided_slice %2 {offsets = [0, 0], sizes = [16, 32], strides = [1, 1]} : vector<16x256xf32> to vector<16x32xf32>
    %4 = arith.truncf %3 : vector<16x32xf32> to vector<16x32xbf16>
    %c0_3 = arith.constant 0 : index
    %c0_4 = arith.constant 0 : index
    %5 = vector.load %arg12[%c0_3, %c0_4] : memref<128x32xbf16, #tpu.memory_space<vmem>>, vector<16x32xbf16>
    tpu.vector_store %arg12[%c0_3, %c0_4], %4 {strides = array<i32>} : memref<128x32xbf16, #tpu.memory_space<vmem>>, vector<16x32xbf16>,
    %6 = vector.extract_strided_slice %2 {offsets = [0, 32], sizes = [16, 32], strides = [1, 1]} : vector<16x256xf32> to vector<16x32xf32>
    %7 = arith.truncf %6 : vector<16x32xf32> to vector<16x32xbf16>
    %c16 = arith.constant 16 : index
    %c0_5 = arith.constant 0 : index
    %8 = vector.load %arg12[%c16, %c0_5] : memref<128x32xbf16, #tpu.memory_space<vmem>>, vector<16x32xbf16>
    tpu.vector_store %arg12[%c16, %c0_5], %7 {strides = array<i32>} : memref<128x32xbf16, #tpu.memory_space<vmem>>, vector<16x32xbf16>,
    %9 = vector.extract_strided_slice %2 {offsets = [0, 64], sizes = [16, 32], strides = [1, 1]} : vector<16x256xf32> to vector<16x32xf32>
    %10 = arith.truncf %9 : vector<16x32xf32> to vector<16x32xbf16>
    %c32 = arith.constant 32 : index
    %c0_6 = arith.constant 0 : index
    %11 = vector.load %arg12[%c32, %c0_6] : memref<128x32xbf16, #tpu.memory_space<vmem>>, vector<16x32xbf16>
    tpu.vector_store %arg12[%c32, %c0_6], %10 {strides = array<i32>} : memref<128x32xbf16, #tpu.memory_space<vmem>>, vector<16x32xbf16>,
    %12 = vector.extract_strided_slice %2 {offsets = [0, 96], sizes = [16, 32], strides = [1, 1]} : vector<16x256xf32> to vector<16x32xf32>
    %13 = arith.truncf %12 : vector<16x32xf32> to vector<16x32xbf16>
    %c48 = arith.constant 48 : index
    %c0_7 = arith.constant 0 : index
    %14 = vector.load %arg12[%c48, %c0_7] : memref<128x32xbf16, #tpu.memory_space<vmem>>, vector<16x32xbf16>
    tpu.vector_store %arg12[%c48, %c0_7], %13 {strides = array<i32>} : memref<128x32xbf16, #tpu.memory_space<vmem>>, vector<16x32xbf16>,
    %15 = vector.extract_strided_slice %2 {offsets = [0, 128], sizes = [16, 32], strides = [1, 1]} : vector<16x256xf32> to vector<16x32xf32>
    %16 = arith.truncf %15 : vector<16x32xf32> to vector<16x32xbf16>
    %c64 = arith.constant 64 : index
    %c0_8 = arith.constant 0 : index
    %17 = vector.load %arg12[%c64, %c0_8] : memref<128x32xbf16, #tpu.memory_space<vmem>>, vector<16x32xbf16>
    tpu.vector_store %arg12[%c64, %c0_8], %16 {strides = array<i32>} : memref<128x32xbf16, #tpu.memory_space<vmem>>, vector<16x32xbf16>,
    %18 = vector.extract_strided_slice %2 {offsets = [0, 160], sizes = [16, 32], strides = [1, 1]} : vector<16x256xf32> to vector<16x32xf32>
    %19 = arith.truncf %18 : vector<16x32xf32> to vector<16x32xbf16>
    %c80 = arith.constant 80 : index
    %c0_9 = arith.constant 0 : index
    %20 = vector.load %arg12[%c80, %c0_9] : memref<128x32xbf16, #tpu.memory_space<vmem>>, vector<16x32xbf16>
    tpu.vector_store %arg12[%c80, %c0_9], %19 {strides = array<i32>} : memref<128x32xbf16, #tpu.memory_space<vmem>>, vector<16x32xbf16>,
    %21 = vector.extract_strided_slice %2 {offsets = [0, 192], sizes = [16, 32], strides = [1, 1]} : vector<16x256xf32> to vector<16x32xf32>
    %22 = arith.truncf %21 : vector<16x32xf32> to vector<16x32xbf16>
    %c96 = arith.constant 96 : index
    %c0_10 = arith.constant 0 : index
    %23 = vector.load %arg12[%c96, %c0_10] : memref<128x32xbf16, #tpu.memory_space<vmem>>, vector<16x32xbf16>
    tpu.vector_store %arg12[%c96, %c0_10], %22 {strides = array<i32>} : memref<128x32xbf16, #tpu.memory_space<vmem>>, vector<16x32xbf16>,
    %24 = vector.extract_strided_slice %2 {offsets = [0, 224], sizes = [16, 32], strides = [1, 1]} : vector<16x256xf32> to vector<16x32xf32>
    %25 = arith.truncf %24 : vector<16x32xf32> to vector<16x32xbf16>
    %c112 = arith.constant 112 : index
    %c0_11 = arith.constant 0 : index
    %26 = vector.load %arg12[%c112, %c0_11] : memref<128x32xbf16, #tpu.memory_space<vmem>>, vector<16x32xbf16>
    tpu.vector_store %arg12[%c112, %c0_11], %25 {strides = array<i32>} : memref<128x32xbf16, #tpu.memory_space<vmem>>, vector<16x32xbf16>,
    %c0_12 = arith.constant 0 : index
    %c0_13 = arith.constant 0 : index
    %27 = vector.load %arg1[%c0_12, %c0_13] : memref<16x128xbf16, #tpu.memory_space<vmem>>, vector<16x128xbf16>
    %c0_14 = arith.constant 0 : index
    %c0_15 = arith.constant 0 : index
    %28 = vector.load %arg12[%c0_14, %c0_15] : memref<128x32xbf16, #tpu.memory_space<vmem>>, vector<128x32xbf16>
    %cst_16 = arith.constant dense<0.000000e+00> : vector<16x32xf32>
    %29 = tpu.matmul %27, %28, %cst_16 {dimension_numbers = #tpu.dot_dimension_numbers<[1], [0], [0], [1], [0, 0, 1, 1], [], []>} : vector<16x128xbf16>, vector<128x32xbf16>, vector<16x32xf32> -> vector<16x32xf32>
    %c0_17 = arith.constant 0 : index
    %c0_18 = arith.constant 0 : index
    %30 = vector.load %arg3[%c0_17, %c0_18] : memref<16x1xf32, #tpu.memory_space<vmem>>, vector<16x1xf32>
    %31 = vector.broadcast %30 : vector<16x1xf32> to vector<16x32xf32>
    %32 = arith.mulf %29, %31 : vector<16x32xf32>
    %c0_19 = arith.constant 0 : index
    %c0_20 = arith.constant 0 : index
    %33 = vector.load %arg6[%c0_19, %c0_20] : memref<128x32xbf16, #tpu.memory_space<vmem>>, vector<128x32xbf16>
    %cst_21 = arith.constant dense<0.000000e+00> : vector<16x32xf32>
    %34 = tpu.matmul %0, %33, %cst_21 {dimension_numbers = #tpu.dot_dimension_numbers<[1], [0], [0], [1], [0, 0, 1, 1], [], []>} : vector<16x128xbf16>, vector<128x32xbf16>, vector<16x32xf32> -> vector<16x32xf32>
    %35 = arith.addf %32, %34 : vector<16x32xf32>
    %c0_22 = arith.constant 0 : index
    %c0_23 = arith.constant 0 : index
    %36 = vector.load %arg7[%c0_22, %c0_23] : memref<1x32xf32, #tpu.memory_space<vmem>>, vector<1x32xf32>
    %37 = vector.broadcast %36 : vector<1x32xf32> to vector<16x32xf32>
    %38 = arith.addf %35, %37 : vector<16x32xf32>
    %39 = arith.truncf %38 : vector<16x32xf32> to vector<16x32xbf16>
    %c0_24 = arith.constant 0 : index
    %c0_25 = arith.constant 0 : index
    %40 = vector.load %arg8[%c0_24, %c0_25] : memref<32x128xbf16, #tpu.memory_space<vmem>>, vector<32x128xbf16>
    %cst_26 = arith.constant dense<0.000000e+00> : vector<16x128xf32>
    %41 = tpu.matmul %39, %40, %cst_26 {dimension_numbers = #tpu.dot_dimension_numbers<[1], [0], [0], [1], [0, 0, 1, 1], [], []>} : vector<16x32xbf16>, vector<32x128xbf16>, vector<16x128xf32> -> vector<16x128xf32>
    %c0_27 = arith.constant 0 : index
    %c0_28 = arith.constant 0 : index
    %42 = vector.load %arg2[%c0_27, %c0_28] : memref<16x16xbf16, #tpu.memory_space<vmem>>, vector<16x16xbf16>
    %43 = arith.truncf %41 : vector<16x128xf32> to vector<16x128xbf16>
    %cst_29 = arith.constant dense<0.000000e+00> : vector<16x128xf32>
    %44 = tpu.matmul %42, %43, %cst_29 {dimension_numbers = #tpu.dot_dimension_numbers<[1], [0], [0], [1], [0, 0, 1, 1], [], []>} : vector<16x16xbf16>, vector<16x128xbf16>, vector<16x128xf32> -> vector<16x128xf32>
    %c0_30 = arith.constant 0 : index
    %c0_31 = arith.constant 0 : index
    %45 = vector.load %arg9[%c0_30, %c0_31] : memref<32x128xbf16, #tpu.memory_space<vmem>>, vector<32x128xbf16>
    %cst_32 = arith.constant dense<0.000000e+00> : vector<16x128xf32>
    %46 = tpu.matmul %39, %45, %cst_32 {dimension_numbers = #tpu.dot_dimension_numbers<[1], [0], [0], [1], [0, 0, 1, 1], [], []>} : vector<16x32xbf16>, vector<32x128xbf16>, vector<16x128xf32> -> vector<16x128xf32>
    %c0_33 = arith.constant 0 : index
    %c0_34 = arith.constant 0 : index
    %47 = vector.load %arg10[%c0_33, %c0_34] : memref<1x128xf32, #tpu.memory_space<vmem>>, vector<1x128xf32>
    %48 = vector.broadcast %47 : vector<1x128xf32> to vector<16x128xf32>
    %49 = arith.addf %46, %48 : vector<16x128xf32>
    %50 = arith.addf %44, %49 : vector<16x128xf32>
    %c0_35 = arith.constant 0 : index
    %c0_36 = arith.constant 0 : index
    %51 = vector.load %arg11[%c0_35, %c0_36] : memref<16x128xf32, #tpu.memory_space<vmem>>, vector<16x128xf32>
    tpu.vector_store %arg11[%c0_35, %c0_36], %50 {strides = array<i32>} : memref<16x128xf32, #tpu.memory_space<vmem>>, vector<16x128xf32>,
    return
  }
  func.func @transform_0(%arg0: i32) -> (i32, i32) {
    %c0_i32 = arith.constant 0 : i32
    %c0_i32_0 = arith.constant 0 : i32
    %c0_i32_1 = arith.constant 0 : i32
    return %c0_i32, %c0_i32_0 : i32, i32
  }
  func.func @transform_1(%arg0: i32) -> (i32, i32) {
    %c0_i32 = arith.constant 0 : i32
    %c0_i32_0 = arith.constant 0 : i32
    %c0_i32_1 = arith.constant 0 : i32
    return %c0_i32, %c0_i32_0 : i32, i32
  }
  func.func @transform_2(%arg0: i32) -> (i32, i32) {
    %c0_i32 = arith.constant 0 : i32
    %c0_i32_0 = arith.constant 0 : i32
    %c0_i32_1 = arith.constant 0 : i32
    return %c0_i32, %c0_i32_0 : i32, i32
  }
  func.func @transform_3(%arg0: i32) -> (i32, i32) {
    %c0_i32 = arith.constant 0 : i32
    %c0_i32_0 = arith.constant 0 : i32
    %c0_i32_1 = arith.constant 0 : i32
    return %c0_i32, %c0_i32_0 : i32, i32
  }
  func.func @transform_4(%arg0: i32) -> (i32, i32) {
    %c0_i32 = arith.constant 0 : i32
    %c0_i32_0 = arith.constant 0 : i32
    %c0_i32_1 = arith.constant 0 : i32
    return %c0_i32, %c0_i32_0 : i32, i32
  }
  func.func @transform_5(%arg0: i32) -> (i32, i32) {
    %c0_i32 = arith.constant 0 : i32
    %c0_i32_0 = arith.constant 0 : i32
    %c0_i32_1 = arith.constant 0 : i32
    return %c0_i32, %c0_i32_0 : i32, i32
  }
  func.func @transform_6(%arg0: i32) -> (i32, i32) {
    %c0_i32 = arith.constant 0 : i32
    %c0_i32_0 = arith.constant 0 : i32
    %c0_i32_1 = arith.constant 0 : i32
    return %c0_i32, %c0_i32_0 : i32, i32
  }
  func.func @transform_7(%arg0: i32) -> (i32, i32) {
    %c0_i32 = arith.constant 0 : i32
    %c0_i32_0 = arith.constant 0 : i32
    %c0_i32_1 = arith.constant 0 : i32
    return %c0_i32, %c0_i32_0 : i32, i32
  }
  func.func @transform_8(%arg0: i32) -> (i32, i32) {
    %c0_i32 = arith.constant 0 : i32
    %c0_i32_0 = arith.constant 0 : i32
    %c0_i32_1 = arith.constant 0 : i32
    return %c0_i32, %c0_i32_0 : i32, i32
  }
  func.func @transform_9(%arg0: i32) -> (i32, i32) {
    %c0_i32 = arith.constant 0 : i32
    %c0_i32_0 = arith.constant 0 : i32
    %c0_i32_1 = arith.constant 0 : i32
    return %c0_i32, %c0_i32_0 : i32, i32
  }
  func.func @transform_10(%arg0: i32) -> (i32, i32) {
    %c0_i32 = arith.constant 0 : i32
    %c0_i32_0 = arith.constant 0 : i32
    %c0_i32_1 = arith.constant 0 : i32
    return %c0_i32, %c0_i32_0 : i32, i32
  }
}

</mosaic_0001>

<llo_original>
// kernel: tpu_custom_call.1
$region0: #{tpu_custom_call.1}
  #allocation0 [shape = 'u32[]', space=smem, size = 0x4, offset = 0x4, fixed_abs, tag = 'smem constant byte address 0x4 - core index']
  #allocation1 [shape = 'u32[144,128]{1,0:T(1,128)}', space=vmem, size = 0x12000, scoped, tag = 'internal scratch']
  #allocation2 [shape = 'bf16[128,32]{1,0:T(16,128)(2,1)}', space=vmem, size = 0x8000, scoped, tag = 'scratch operand']
  %s0 = inlined_call_operand.vmem [shape: bf16[16,128], index: 0, kind: input, shape index: {}]
  %s1 = inlined_call_operand.vmem [shape: bf16[16,16], index: 1, kind: input, shape index: {}]
  %s2 = inlined_call_operand.vmem [shape: f32[16,1], index: 2, kind: input, shape index: {}]
  %s3 = inlined_call_operand.vmem [shape: bf16[16,128], index: 3, kind: input, shape index: {}]
  %s4 = inlined_call_operand.hbm [shape: bf16[128,256], index: 4, kind: input, shape index: {}]
  %s5 = inlined_call_operand.vmem [shape: bf16[128,32], index: 5, kind: input, shape index: {}]
  %s6 = inlined_call_operand.vmem [shape: f32[1,32], index: 6, kind: input, shape index: {}]
  %s7 = inlined_call_operand.vmem [shape: bf16[32,128], index: 7, kind: input, shape index: {}]
  %s8 = inlined_call_operand.vmem [shape: bf16[32,128], index: 8, kind: input, shape index: {}]
  %s9 = inlined_call_operand.vmem [shape: f32[1,128], index: 9, kind: input, shape index: {}]
  %s10 = inlined_call_operand.hbm [shape: f32[16,128], index: 10, kind: output, shape index: {}]
  %s11 = sld [smem:[#allocation0]]
  $region54: #{tpu_custom_call.1} parent=0
    _
  %s13 = ssub.s32 1, %s11
  %s14 = scalar_select 0, %s13, %s11
  $region1: #{tpu_custom_call.1} parent=0
    #allocation3 [shape = 'u8[65536]{0}', space=vmem, size = 0x10000, scoped, tag = 'input window, operand 4, single buffered']
    #allocation4 [shape = 's32[1]{0}', space=sflag, size = 0x4, scoped, tag = 'scoped memory for tpu_custom_call.1']
    #allocation5 [shape = 's32[1]{0}', space=sflag, size = 0x4, scoped, tag = 'scoped memory for tpu_custom_call.1']
    #allocation6 [shape = 'u8[8192]{0}', space=vmem, size = 0x2000, scoped, tag = 'output window, operand 0, single buffered']
    %15 = vsyncpa [#allocation4], 0
    %16 = vsyncpa [#allocation5], 0
    // Predicated region
    $region2: #{tpu_custom_call.1} parent=1 // pred_check
      _
    $region3: #{tpu_custom_call.1} parent=1 // pred_check_branch
      %18 = sbr.rel (0) target = $region5
    $region4: #{tpu_custom_call.1} parent=1 // pred_region
      _
    $region5: #{tpu_custom_call.1} parent=1 // pred_fallthru
      _
    // Predicated region
    $region6: #{tpu_custom_call.1} parent=1 // pred_check
      _
    $region7: #{tpu_custom_call.1} parent=1 // pred_check_branch
      %20 = sbr.rel (0) target = $region9
    $region8: #{tpu_custom_call.1} parent=1 // pred_region
      _
    $region9: #{tpu_custom_call.1} parent=1 // pred_fallthru
      _
    // Predicated region
    $region10: #{tpu_custom_call.1} parent=1 // pred_check
      _
    $region11: #{tpu_custom_call.1} parent=1 // pred_check_branch
      %22 = sbr.rel (0) target = $region13
    $region12: #{tpu_custom_call.1} parent=1 // pred_region
      _
    $region13: #{tpu_custom_call.1} parent=1 // pred_fallthru
      _
    // Predicated region
    $region14: #{tpu_custom_call.1} parent=1 // pred_check
      _
    $region15: #{tpu_custom_call.1} parent=1 // pred_check_branch
      %24 = sbr.rel (0) target = $region17
    $region16: #{tpu_custom_call.1} parent=1 // pred_region
      _
    $region17: #{tpu_custom_call.1} parent=1 // pred_fallthru
      _
    // Predicated region
    $region18: #{tpu_custom_call.1} parent=1 // pred_check
      _
    $region19: #{tpu_custom_call.1} parent=1 // pred_check_branch
      %26 = sbr.rel (0) target = $region21
    $region20: #{tpu_custom_call.1} parent=1 // pred_region
      %s28 = ssub.s32 2048, 2048
      %29 = vsyncadd [#allocation4], %s28
      %s30 = sshll.u32 [#allocation3], 4
      %s31 = int_to_ptr.vmem [resolvable:$true] %s30
      %36 = dma.hbm_to_vmem [thread:$0]  %s4, 2048, %s31, [#allocation4], 128, 128, 8
    $region21: #{tpu_custom_call.1} parent=1 // pred_fallthru
      _
    // Predicated region
    $region22: #{tpu_custom_call.1} parent=1 // pred_check
      _
    $region23: #{tpu_custom_call.1} parent=1 // pred_check_branch
      %38 = sbr.rel (0) target = $region25
    $region24: #{tpu_custom_call.1} parent=1 // pred_region
      _
    $region25: #{tpu_custom_call.1} parent=1 // pred_fallthru
      _
    // Predicated region
    $region26: #{tpu_custom_call.1} parent=1 // pred_check
      _
    $region27: #{tpu_custom_call.1} parent=1 // pred_check_branch
      %40 = sbr.rel (0) target = $region29
    $region28: #{tpu_custom_call.1} parent=1 // pred_region
      _
    $region29: #{tpu_custom_call.1} parent=1 // pred_fallthru
      _
    // Predicated region
    $region30: #{tpu_custom_call.1} parent=1 // pred_check
      _
    $region31: #{tpu_custom_call.1} parent=1 // pred_check_branch
      %42 = sbr.rel (0) target = $region33
    $region32: #{tpu_custom_call.1} parent=1 // pred_region
      _
    $region33: #{tpu_custom_call.1} parent=1 // pred_fallthru
      _
    // Predicated region
    $region34: #{tpu_custom_call.1} parent=1 // pred_check
      _
    $region35: #{tpu_custom_call.1} parent=1 // pred_check_branch
      %44 = sbr.rel (0) target = $region37
    $region36: #{tpu_custom_call.1} parent=1 // pred_region
      _
    $region37: #{tpu_custom_call.1} parent=1 // pred_fallthru
      _
    // Predicated region
    $region38: #{tpu_custom_call.1} parent=1 // pred_check
      _
    $region39: #{tpu_custom_call.1} parent=1 // pred_check_branch
      %46 = sbr.rel (0) target = $region41
    $region40: #{tpu_custom_call.1} parent=1 // pred_region
      _
    $region41: #{tpu_custom_call.1} parent=1 // pred_fallthru
      _
    // Predicated region
    $region42: #{tpu_custom_call.1} parent=1 // pred_check
      _
    $region43: #{tpu_custom_call.1} parent=1 // pred_check_branch
      %48 = sbr.rel (0) target = $region45
    $region44: #{tpu_custom_call.1} parent=1 // pred_region
      %49 = dma.done [#allocation4], 2048
    $region45: #{tpu_custom_call.1} parent=1 // pred_fallthru
      _
    %v51 = vld [vmem:[%s3] sm:$0xf]
    %v52 = vld [vmem:[%s3 + $0x4] sm:$0xf]
    %v53 = vld [vmem:[#allocation3] sm:$0xff]
    %v54 = vld [vmem:[#allocation3 + $0x8] sm:$0xff]
    %v55 = vld [vmem:[#allocation3 + $0x10] sm:$0xff]
    %v56 = vld [vmem:[#allocation3 + $0x18] sm:$0xff]
    %v57 = vld [vmem:[#allocation3 + $0x20] sm:$0xff]
    %v58 = vld [vmem:[#allocation3 + $0x28] sm:$0xff]
    %v59 = vld [vmem:[#allocation3 + $0x30] sm:$0xff]
    %v60 = vld [vmem:[#allocation3 + $0x38] sm:$0xff]
    %v61 = vld [vmem:[#allocation3 + $0x40] sm:$0xff]
    %v62 = vld [vmem:[#allocation3 + $0x48] sm:$0xff]
    %v63 = vld [vmem:[#allocation3 + $0x50] sm:$0xff]
    %v64 = vld [vmem:[#allocation3 + $0x58] sm:$0xff]
    %v65 = vld [vmem:[#allocation3 + $0x60] sm:$0xff]
    %v66 = vld [vmem:[#allocation3 + $0x68] sm:$0xff]
    %v67 = vld [vmem:[#allocation3 + $0x70] sm:$0xff]
    %v68 = vld [vmem:[#allocation3 + $0x78] sm:$0xff]
    %v71 = vunpack.c.l.b16 %v51
    %v72 = vunpack.c.l.b16 %v52
    %v73 = vpack.c.b16 %v72, %v71
    %v91 = vunpack.c.l.b16 %v53
    %v92 = vunpack.c.h.b16 %v53
    %v93 = vunpack.c.l.b16 %v54
    %v94 = vunpack.c.h.b16 %v54
    %v95 = vunpack.c.l.b16 %v55
    %v96 = vunpack.c.h.b16 %v55
    %v97 = vunpack.c.l.b16 %v56
    %v98 = vunpack.c.h.b16 %v56
    %v99 = vunpack.c.l.b16 %v57
    %v100 = vunpack.c.h.b16 %v57
    %v101 = vunpack.c.l.b16 %v58
    %v102 = vunpack.c.h.b16 %v58
    %v103 = vunpack.c.l.b16 %v59
    %v104 = vunpack.c.h.b16 %v59
    %v105 = vunpack.c.l.b16 %v60
    %v106 = vunpack.c.h.b16 %v60
    %v107 = vunpack.c.l.b16 %v61
    %v108 = vunpack.c.h.b16 %v61
    %v109 = vunpack.c.l.b16 %v62
    %v110 = vunpack.c.h.b16 %v62
    %v111 = vunpack.c.l.b16 %v63
    %v112 = vunpack.c.h.b16 %v63
    %v113 = vunpack.c.l.b16 %v64
    %v114 = vunpack.c.h.b16 %v64
    %v115 = vunpack.c.l.b16 %v65
    %v116 = vunpack.c.h.b16 %v65
    %v117 = vunpack.c.l.b16 %v66
    %v118 = vunpack.c.h.b16 %v66
    %v119 = vunpack.c.l.b16 %v67
    %v120 = vunpack.c.h.b16 %v67
    %v121 = vunpack.c.l.b16 %v68
    %v122 = vunpack.c.h.b16 %v68
    %v123 = vpack.c.b16 %v93, %v91
    %v124 = vpack.c.b16 %v94, %v92
    %v125 = vpack.c.b16 %v97, %v95
    %v126 = vpack.c.b16 %v98, %v96
    %v127 = vpack.c.b16 %v101, %v99
    %v128 = vpack.c.b16 %v102, %v100
    %v129 = vpack.c.b16 %v105, %v103
    %v130 = vpack.c.b16 %v106, %v104
    %v131 = vpack.c.b16 %v109, %v107
    %v132 = vpack.c.b16 %v110, %v108
    %v133 = vpack.c.b16 %v113, %v111
    %v134 = vpack.c.b16 %v114, %v112
    %v135 = vpack.c.b16 %v117, %v115
    %v136 = vpack.c.b16 %v118, %v116
    %v137 = vpack.c.b16 %v121, %v119
    %v138 = vpack.c.b16 %v122, %v120
    %155 = vmatprep.subr.bf16.mxu0 %v124
    %156 = vmatpush1.bf16.msra.mxu0 %v123
    %157 = vmatprep.subr.bf16.mxu0 %v126
    %158 = vmatpush1.bf16.msra.mxu0 %v125
    %159 = vmatprep.subr.bf16.mxu0 %v128
    %160 = vmatpush1.bf16.msra.mxu0 %v127
    %161 = vmatprep.subr.bf16.mxu0 %v130
    %162 = vmatpush1.bf16.msra.mxu0 %v129
    %163 = vmatprep.subr.bf16.mxu0 %v132
    %164 = vmatpush1.bf16.msra.mxu0 %v131
    %165 = vmatprep.subr.bf16.mxu0 %v134
    %166 = vmatpush1.bf16.msra.mxu0 %v133
    %167 = vmatprep.subr.bf16.mxu0 %v136
    %168 = vmatpush1.bf16.msra.mxu0 %v135
    %169 = vmatprep.subr.bf16.mxu0 %v138
    %170 = vmatpush1.bf16.msra.mxu0 %v137
    %171 = vmatprep.subr.bf16.mxu0 0
    %172 = vmatpush1.bf16.msra.mxu0 0
    %173 = vmatprep.subr.bf16.mxu0 0
    %174 = vmatpush1.bf16.msra.mxu0 0
    %175 = vmatprep.subr.bf16.mxu0 0
    %176 = vmatpush1.bf16.msra.mxu0 0
    %177 = vmatprep.subr.bf16.mxu0 0
    %178 = vmatpush1.bf16.msra.mxu0 0
    %179 = vmatprep.subr.bf16.mxu0 0
    %180 = vmatpush1.bf16.msra.mxu0 0
    %181 = vmatprep.subr.bf16.mxu0 0
    %182 = vmatpush1.bf16.msra.mxu0 0
    %183 = vmatprep.subr.bf16.mxu0 0
    %184 = vmatpush1.bf16.msra.mxu0 0
    %185 = vmatprep.subr.bf16.mxu0 0
    %186 = vmatpush1.bf16.msra.mxu0 0
    %187 = vmatprep.mubr.bf16.mxu0 0
    %188 = vmatmul.mubr.bf16.gmra.mrb[0].mxu0 %v73
    %v189 = vpop.f32.mrb[0].mxu0
    %v190 = vadd.f32 0.0, %v189
    %v191 = vpop.f32.mrb[0].mxu0
    %v192 = vadd.f32 0.0, %v191
    %v193 = vpop.f32.mrb[0].mxu0
    %v194 = vadd.f32 0.0, %v193
    %v195 = vpop.f32.mrb[0].mxu0
    %v196 = vadd.f32 0.0, %v195
    %197 = vdwg.mxu0
    %v198 = vpack.c.bf16 %v194, %v190
    %vm199 = vcmask 261120
    %200 = vst.msk [vmem:[#allocation2] sm:$0xff] %vm199, %v198
    %202 = vrot.lane.b32.xlu0 %v198, 96
    %v203 = vpop.permute.xlu0 %202
    %205 = vst.msk [vmem:[#allocation2 + $0x8] sm:$0xff] %vm199, %v203
    %206 = vrot.lane.b32.xlu0 %v198, 64
    %v207 = vpop.permute.xlu0 %206
    %209 = vst.msk [vmem:[#allocation2 + $0x10] sm:$0xff] %vm199, %v207
    %210 = vrot.lane.b32.xlu0 %v198, 32
    %v211 = vpop.permute.xlu0 %210
    %213 = vst.msk [vmem:[#allocation2 + $0x18] sm:$0xff] %vm199, %v211
    %v214 = vpack.c.bf16 %v196, %v192
    %215 = vst.msk [vmem:[#allocation2 + $0x20] sm:$0xff] %vm199, %v214
    %217 = vrot.lane.b32.xlu0 %v214, 96
    %v218 = vpop.permute.xlu0 %217
    %220 = vst.msk [vmem:[#allocation2 + $0x28] sm:$0xff] %vm199, %v218
    %221 = vrot.lane.b32.xlu0 %v214, 64
    %v222 = vpop.permute.xlu0 %221
    %224 = vst.msk [vmem:[#allocation2 + $0x30] sm:$0xff] %vm199, %v222
    %225 = vrot.lane.b32.xlu0 %v214, 32
    %v226 = vpop.permute.xlu0 %225
    %228 = vst.msk [vmem:[#allocation2 + $0x38] sm:$0xff] %vm199, %v226
    %v229 = vld [vmem:[%s0] sm:$0xf]
    %v230 = vld [vmem:[%s0 + $0x4] sm:$0xf]
    %v231 = vld [vmem:[#allocation2] sm:$0xff]
    %v232 = vld [vmem:[#allocation2 + $0x8] sm:$0xff]
    %v233 = vld [vmem:[#allocation2 + $0x10] sm:$0xff]
    %v234 = vld [vmem:[#allocation2 + $0x18] sm:$0xff]
    %v235 = vld [vmem:[#allocation2 + $0x20] sm:$0xff]
    %v236 = vld [vmem:[#allocation2 + $0x28] sm:$0xff]
    %v237 = vld [vmem:[#allocation2 + $0x30] sm:$0xff]
    %v238 = vld [vmem:[#allocation2 + $0x38] sm:$0xff]
    %v241 = vunpack.c.l.b16 %v229
    %v242 = vunpack.c.l.b16 %v230
    %v243 = vpack.c.b16 %v242, %v241
    %245 = vmatprep.subr.bf16.mxu0 0
    %246 = vmatpush1.bf16.msra.mxu0 %v231
    %247 = vmatprep.subr.bf16.mxu0 0
    %248 = vmatpush1.bf16.msra.mxu0 %v232
    %249 = vmatprep.subr.bf16.mxu0 0
    %250 = vmatpush1.bf16.msra.mxu0 %v233
    %251 = vmatprep.subr.bf16.mxu0 0
    %252 = vmatpush1.bf16.msra.mxu0 %v234
    %253 = vmatprep.subr.bf16.mxu0 0
    %254 = vmatpush1.bf16.msra.mxu0 %v235
    %255 = vmatprep.subr.bf16.mxu0 0
    %256 = vmatpush1.bf16.msra.mxu0 %v236
    %257 = vmatprep.subr.bf16.mxu0 0
    %258 = vmatpush1.bf16.msra.mxu0 %v237
    %259 = vmatprep.subr.bf16.mxu0 0
    %260 = vmatpush1.bf16.msra.mxu0 %v238
    %261 = vmatprep.subr.bf16.mxu0 0
    %262 = vmatpush1.bf16.msra.mxu0 0
    %263 = vmatprep.subr.bf16.mxu0 0
    %264 = vmatpush1.bf16.msra.mxu0 0
    %265 = vmatprep.subr.bf16.mxu0 0
    %266 = vmatpush1.bf16.msra.mxu0 0
    %267 = vmatprep.subr.bf16.mxu0 0
    %268 = vmatpush1.bf16.msra.mxu0 0
    %269 = vmatprep.subr.bf16.mxu0 0
    %270 = vmatpush1.bf16.msra.mxu0 0
    %271 = vmatprep.subr.bf16.mxu0 0
    %272 = vmatpush1.bf16.msra.mxu0 0
    %273 = vmatprep.subr.bf16.mxu0 0
    %274 = vmatpush1.bf16.msra.mxu0 0
    %275 = vmatprep.subr.bf16.mxu0 0
    %276 = vmatpush1.bf16.msra.mxu0 0
    %277 = vmatprep.mubr.bf16.mxu0 0
    %278 = vmatmul.mubr.bf16.gmra.mrb[0].mxu0 %v243
    %v279 = vpop.f32.mrb[0].mxu0
    %v280 = vadd.f32 0.0, %v279
    %v281 = vpop.f32.mrb[0].mxu0
    %v282 = vpop.f32.mrb[0].mxu0
    %v283 = vadd.f32 0.0, %v282
    %v284 = vpop.f32.mrb[0].mxu0
    %285 = vdwg.mxu0
    %v286 = vld [vmem:[%s2] sm:$0xff]
    %v287 = vld [vmem:[%s2 + $0x8] sm:$0xff]
    %289 = vset.pattern.permute.xlu0 0
    %290 = vperm.xlu0 %289, %v286
    %v291 = vpop.permute.xlu0 %290
    %294 = vset.pattern.permute.xlu0 0
    %295 = vperm.xlu0 %294, %v287
    %v296 = vpop.permute.xlu0 %295
    %v298 = vmul.f32 %v280, %v291
    %v299 = vmul.f32 %v283, %v296
    %v300 = vld [vmem:[%s5] sm:$0xf]
    %v301 = vld [vmem:[%s5 + $0x4] sm:$0xf]
    %v302 = vld [vmem:[%s5 + $0x8] sm:$0xf]
    %v303 = vld [vmem:[%s5 + $0xc] sm:$0xf]
    %v304 = vld [vmem:[%s5 + $0x10] sm:$0xf]
    %v305 = vld [vmem:[%s5 + $0x14] sm:$0xf]
    %v306 = vld [vmem:[%s5 + $0x18] sm:$0xf]
    %v307 = vld [vmem:[%s5 + $0x1c] sm:$0xf]
    %v308 = vld [vmem:[%s5 + $0x20] sm:$0xf]
    %v309 = vld [vmem:[%s5 + $0x24] sm:$0xf]
    %v310 = vld [vmem:[%s5 + $0x28] sm:$0xf]
    %v311 = vld [vmem:[%s5 + $0x2c] sm:$0xf]
    %v312 = vld [vmem:[%s5 + $0x30] sm:$0xf]
    %v313 = vld [vmem:[%s5 + $0x34] sm:$0xf]
    %v314 = vld [vmem:[%s5 + $0x38] sm:$0xf]
    %v315 = vld [vmem:[%s5 + $0x3c] sm:$0xf]
    %v332 = vunpack.c.l.b16 %v300
    %v333 = vunpack.c.l.b16 %v301
    %v334 = vunpack.c.l.b16 %v302
    %v335 = vunpack.c.l.b16 %v303
    %v336 = vunpack.c.l.b16 %v304
    %v337 = vunpack.c.l.b16 %v305
    %v338 = vunpack.c.l.b16 %v306
    %v339 = vunpack.c.l.b16 %v307
    %v340 = vunpack.c.l.b16 %v308
    %v341 = vunpack.c.l.b16 %v309
    %v342 = vunpack.c.l.b16 %v310
    %v343 = vunpack.c.l.b16 %v311
    %v344 = vunpack.c.l.b16 %v312
    %v345 = vunpack.c.l.b16 %v313
    %v346 = vunpack.c.l.b16 %v314
    %v347 = vunpack.c.l.b16 %v315
    %v348 = vpack.c.b16 %v333, %v332
    %v349 = vpack.c.b16 %v335, %v334
    %v350 = vpack.c.b16 %v337, %v336
    %v351 = vpack.c.b16 %v339, %v338
    %v352 = vpack.c.b16 %v341, %v340
    %v353 = vpack.c.b16 %v343, %v342
    %v354 = vpack.c.b16 %v345, %v344
    %v355 = vpack.c.b16 %v347, %v346
    %364 = vmatprep.subr.bf16.mxu0 0
    %365 = vmatpush1.bf16.msra.mxu0 %v348
    %366 = vmatprep.subr.bf16.mxu0 0
    %367 = vmatpush1.bf16.msra.mxu0 %v349
    %368 = vmatprep.subr.bf16.mxu0 0
    %369 = vmatpush1.bf16.msra.mxu0 %v350
    %370 = vmatprep.subr.bf16.mxu0 0
    %371 = vmatpush1.bf16.msra.mxu0 %v351
    %372 = vmatprep.subr.bf16.mxu0 0
    %373 = vmatpush1.bf16.msra.mxu0 %v352
    %374 = vmatprep.subr.bf16.mxu0 0
    %375 = vmatpush1.bf16.msra.mxu0 %v353
    %376 = vmatprep.subr.bf16.mxu0 0
    %377 = vmatpush1.bf16.msra.mxu0 %v354
    %378 = vmatprep.subr.bf16.mxu0 0
    %379 = vmatpush1.bf16.msra.mxu0 %v355
    %380 = vmatprep.subr.bf16.mxu0 0
    %381 = vmatpush1.bf16.msra.mxu0 0
    %382 = vmatprep.subr.bf16.mxu0 0
    %383 = vmatpush1.bf16.msra.mxu0 0
    %384 = vmatprep.subr.bf16.mxu0 0
    %385 = vmatpush1.bf16.msra.mxu0 0
    %386 = vmatprep.subr.bf16.mxu0 0
    %387 = vmatpush1.bf16.msra.mxu0 0
    %388 = vmatprep.subr.bf16.mxu0 0
    %389 = vmatpush1.bf16.msra.mxu0 0
    %390 = vmatprep.subr.bf16.mxu0 0
    %391 = vmatpush1.bf16.msra.mxu0 0
    %392 = vmatprep.subr.bf16.mxu0 0
    %393 = vmatpush1.bf16.msra.mxu0 0
    %394 = vmatprep.subr.bf16.mxu0 0
    %395 = vmatpush1.bf16.msra.mxu0 0
    %396 = vmatprep.mubr.bf16.mxu0 0
    %397 = vmatmul.mubr.bf16.gmra.mrb[0].mxu0 %v73
    %v398 = vpop.f32.mrb[0].mxu0
    %v399 = vadd.f32 0.0, %v398
    %v400 = vpop.f32.mrb[0].mxu0
    %v401 = vpop.f32.mrb[0].mxu0
    %v402 = vadd.f32 0.0, %v401
    %v403 = vpop.f32.mrb[0].mxu0
    %404 = vdwg.mxu0
    %v405 = vadd.f32 %v298, %v399
    %v406 = vadd.f32 %v299, %v402
    %v407 = vld [vmem:[%s6] sm:$0x1]
    %v409 = vlaneseq
    %v410 = vshrl.u32 %v409, 7
    %v411 = vsub.s32 0, %v410
    %v412 = vrot.slane %v407, %v411
    %v414 = vadd.f32 %v405, %v412
    %v415 = vadd.f32 %v406, %v412
    %v416 = vpack.c.bf16 %v415, %v414
    %v417 = vld [vmem:[%s7] sm:$0xf]
    %v418 = vld [vmem:[%s7 + $0x4] sm:$0xf]
    %v419 = vld [vmem:[%s7 + $0x8] sm:$0xf]
    %v420 = vld [vmem:[%s7 + $0xc] sm:$0xf]
    %v425 = vunpack.c.l.b16 %v417
    %v426 = vunpack.c.l.b16 %v418
    %v427 = vunpack.c.l.b16 %v419
    %v428 = vunpack.c.l.b16 %v420
    %v429 = vpack.c.b16 %v426, %v425
    %v430 = vpack.c.b16 %v428, %v427
    %v434 = vsel %vm199, %v416, 0
    %436 = vmatprep.subr.bf16.mxu0 0
    %437 = vmatpush1.bf16.msra.mxu0 %v429
    %438 = vmatprep.subr.bf16.mxu0 0
    %439 = vmatpush1.bf16.msra.mxu0 %v430
    %440 = vmatprep.subr.bf16.mxu0 0
    %441 = vmatpush1.bf16.msra.mxu0 0
    %442 = vmatprep.subr.bf16.mxu0 0
    %443 = vmatpush1.bf16.msra.mxu0 0
    %444 = vmatprep.subr.bf16.mxu0 0
    %445 = vmatpush1.bf16.msra.mxu0 0
    %446 = vmatprep.subr.bf16.mxu0 0
    %447 = vmatpush1.bf16.msra.mxu0 0
    %448 = vmatprep.subr.bf16.mxu0 0
    %449 = vmatpush1.bf16.msra.mxu0 0
    %450 = vmatprep.subr.bf16.mxu0 0
    %451 = vmatpush1.bf16.msra.mxu0 0
    %452 = vmatprep.subr.bf16.mxu0 0
    %453 = vmatpush1.bf16.msra.mxu0 0
    %454 = vmatprep.subr.bf16.mxu0 0
    %455 = vmatpush1.bf16.msra.mxu0 0
    %456 = vmatprep.subr.bf16.mxu0 0
    %457 = vmatpush1.bf16.msra.mxu0 0
    %458 = vmatprep.subr.bf16.mxu0 0
    %459 = vmatpush1.bf16.msra.mxu0 0
    %460 = vmatprep.subr.bf16.mxu0 0
    %461 = vmatpush1.bf16.msra.mxu0 0
    %462 = vmatprep.subr.bf16.mxu0 0
    %463 = vmatpush1.bf16.msra.mxu0 0
    %464 = vmatprep.subr.bf16.mxu0 0
    %465 = vmatpush1.bf16.msra.mxu0 0
    %466 = vmatprep.subr.bf16.mxu0 0
    %467 = vmatpush1.bf16.msra.mxu0 0
    %468 = vmatprep.mubr.bf16.mxu0 0
    %469 = vmatmul.mubr.bf16.gmra.mrb[0].mxu0 %v434
    %v470 = vpop.f32.mrb[0].mxu0
    %v471 = vadd.f32 0.0, %v470
    %v472 = vpop.f32.mrb[0].mxu0
    %v473 = vpop.f32.mrb[0].mxu0
    %v474 = vadd.f32 0.0, %v473
    %v475 = vpop.f32.mrb[0].mxu0
    %476 = vdwg.mxu0
    %v477 = vld [vmem:[%s1] sm:$0xf]
    %v478 = vld [vmem:[%s1 + $0x4] sm:$0xf]
    %v479 = vpack.c.bf16 %v474, %v471
    %v480 = vld [vmem:[%s8] sm:$0xf]
    %v481 = vld [vmem:[%s8 + $0x4] sm:$0xf]
    %v482 = vld [vmem:[%s8 + $0x8] sm:$0xf]
    %v483 = vld [vmem:[%s8 + $0xc] sm:$0xf]
    %v484 = vld [vmem:[%s9] sm:$0x1]
    %v486 = vlaneseq
    %v487 = vshrl.u32 %v486, 7
    %v488 = vsub.s32 0, %v487
    %v489 = vrot.slane %v484, %v488
    %v495 = vunpack.c.l.b16 %v480
    %v496 = vunpack.c.l.b16 %v481
    %v497 = vunpack.c.l.b16 %v482
    %v498 = vunpack.c.l.b16 %v483
    %v499 = vpack.c.b16 %v496, %v495
    %v500 = vpack.c.b16 %v498, %v497
    %503 = vmatprep.subr.bf16.mxu0 0
    %504 = vmatpush1.bf16.msra.mxu0 %v499
    %505 = vmatprep.subr.bf16.mxu0 0
    %506 = vmatpush1.bf16.msra.mxu0 %v500
    %507 = vmatprep.subr.bf16.mxu0 0
    %508 = vmatpush1.bf16.msra.mxu0 0
    %509 = vmatprep.subr.bf16.mxu0 0
    %510 = vmatpush1.bf16.msra.mxu0 0
    %511 = vmatprep.subr.bf16.mxu0 0
    %512 = vmatpush1.bf16.msra.mxu0 0
    %513 = vmatprep.subr.bf16.mxu0 0
    %514 = vmatpush1.bf16.msra.mxu0 0
    %515 = vmatprep.subr.bf16.mxu0 0
    %516 = vmatpush1.bf16.msra.mxu0 0
    %517 = vmatprep.subr.bf16.mxu0 0
    %518 = vmatpush1.bf16.msra.mxu0 0
    %519 = vmatprep.subr.bf16.mxu0 0
    %520 = vmatpush1.bf16.msra.mxu0 0
    %521 = vmatprep.subr.bf16.mxu0 0
    %522 = vmatpush1.bf16.msra.mxu0 0
    %523 = vmatprep.subr.bf16.mxu0 0
    %524 = vmatpush1.bf16.msra.mxu0 0
    %525 = vmatprep.subr.bf16.mxu0 0
    %526 = vmatpush1.bf16.msra.mxu0 0
    %527 = vmatprep.subr.bf16.mxu0 0
    %528 = vmatpush1.bf16.msra.mxu0 0
    %529 = vmatprep.subr.bf16.mxu0 0
    %530 = vmatpush1.bf16.msra.mxu0 0
    %531 = vmatprep.subr.bf16.mxu0 0
    %532 = vmatpush1.bf16.msra.mxu0 0
    %533 = vmatprep.subr.bf16.mxu0 0
    %534 = vmatpush1.bf16.msra.mxu0 0
    %535 = vmatprep.mubr.bf16.mxu0 0
    %536 = vmatmul.mubr.bf16.gmra.mrb[0].mxu0 %v434
    %v537 = vpop.f32.mrb[0].mxu0
    %v538 = vadd.f32 %v489, %v537
    %v539 = vpop.f32.mrb[0].mxu0
    %v540 = vpop.f32.mrb[0].mxu0
    %v541 = vadd.f32 %v489, %v540
    %v542 = vpop.f32.mrb[0].mxu0
    %543 = vdwg.mxu0
    %v546 = vunpack.c.l.b16 %v477
    %v547 = vunpack.c.l.b16 %v478
    %v548 = vpack.c.b16 %v547, %v546
    %vm549 = vcmask 130048
    %v551 = vsel %vm549, %v548, 0
    %553 = vmatprep.subr.bf16.mxu0 0
    %554 = vmatpush1.bf16.msra.mxu0 %v479
    %555 = vmatprep.subr.bf16.mxu0 0
    %556 = vmatpush1.bf16.msra.mxu0 0
    %557 = vmatprep.subr.bf16.mxu0 0
    %558 = vmatpush1.bf16.msra.mxu0 0
    %559 = vmatprep.subr.bf16.mxu0 0
    %560 = vmatpush1.bf16.msra.mxu0 0
    %561 = vmatprep.subr.bf16.mxu0 0
    %562 = vmatpush1.bf16.msra.mxu0 0
    %563 = vmatprep.subr.bf16.mxu0 0
    %564 = vmatpush1.bf16.msra.mxu0 0
    %565 = vmatprep.subr.bf16.mxu0 0
    %566 = vmatpush1.bf16.msra.mxu0 0
    %567 = vmatprep.subr.bf16.mxu0 0
    %568 = vmatpush1.bf16.msra.mxu0 0
    %569 = vmatprep.subr.bf16.mxu0 0
    %570 = vmatpush1.bf16.msra.mxu0 0
    %571 = vmatprep.subr.bf16.mxu0 0
    %572 = vmatpush1.bf16.msra.mxu0 0
    %573 = vmatprep.subr.bf16.mxu0 0
    %574 = vmatpush1.bf16.msra.mxu0 0
    %575 = vmatprep.subr.bf16.mxu0 0
    %576 = vmatpush1.bf16.msra.mxu0 0
    %577 = vmatprep.subr.bf16.mxu0 0
    %578 = vmatpush1.bf16.msra.mxu0 0
    %579 = vmatprep.subr.bf16.mxu0 0
    %580 = vmatpush1.bf16.msra.mxu0 0
    %581 = vmatprep.subr.bf16.mxu0 0
    %582 = vmatpush1.bf16.msra.mxu0 0
    %583 = vmatprep.subr.bf16.mxu0 0
    %584 = vmatpush1.bf16.msra.mxu0 0
    %585 = vmatprep.mubr.bf16.mxu0 0
    %586 = vmatmul.mubr.bf16.gmra.mrb[0].mxu0 %v551
    %v587 = vpop.f32.mrb[0].mxu0
    %v588 = vadd.f32 %v538, %v587
    %v589 = vpop.f32.mrb[0].mxu0
    %v590 = vpop.f32.mrb[0].mxu0
    %v591 = vadd.f32 %v541, %v590
    %v592 = vpop.f32.mrb[0].mxu0
    %593 = vdwg.mxu0
    %594 = vst [vmem:[#allocation6] sm:$0xff] %v588
    %595 = vst [vmem:[#allocation6 + $0x8] sm:$0xff] %v591
    // Predicated region
    $region46: #{tpu_custom_call.1} parent=1 // pred_check
      _
    $region47: #{tpu_custom_call.1} parent=1 // pred_check_branch
      %597 = sbr.rel (0) target = $region49
    $region48: #{tpu_custom_call.1} parent=1 // pred_region
      %s599 = ssub.s32 256, 256
      %600 = vsyncadd [#allocation5], %s599
      %s601 = sshll.u32 [#allocation6], 4
      %s602 = int_to_ptr.vmem [resolvable:$true] %s601
      %607 = dma.vmem_to_hbm [thread:$0]  %s602, 256, %s10, [#allocation5], 128, 128, 8
    $region49: #{tpu_custom_call.1} parent=1 // pred_fallthru
      _
    // Predicated region
    $region50: #{tpu_custom_call.1} parent=1 // pred_check
      _
    $region51: #{tpu_custom_call.1} parent=1 // pred_check_branch
      %609 = sbr.rel (0) target = $region53
    $region52: #{tpu_custom_call.1} parent=1 // pred_region
      %610 = dma.done [#allocation5], 256
    $region53: #{tpu_custom_call.1} parent=1 // pred_fallthru
      _
    %611 = vsyncpa [#allocation4], 1
    %612 = vsyncpa [#allocation5], 1

</llo_original>
